<compile_context>
chip_gen: v7x
topology: tpu7x:2x2x1
jax: 0.10.0
libtpu: 0.0.40
codegen_flags: <defaults>
</compile_context>

<pallas_src>
import functools
import math

import jax
import jax.numpy as jnp
from jax.experimental import pallas as pl
from jax.experimental.pallas import tpu as pltpu

_LOG_2PI = math.log(2.0 * math.pi)


def _mdn_loss_kernel(real_ref, mean_ref, sinv_ref, alpha_ref, out_ref, *,
                     eps, n_feat):
    """Per-row MDN NLL for one lane-tile of rows.

    Block shapes (rows live in the lane dim):
      real_ref  : (C, TN)
      mean_ref  : (C, K, TN)
      sinv_ref  : (K, TN)
      alpha_ref : (K, TN)
      out_ref   : (1, TN)   float32 per-row NLL
    """
    f32 = jnp.float32

    real = real_ref[...].astype(f32)       # (C, TN)  tiny
    sinv = sinv_ref[...].astype(f32)       # (K, TN)
    alpha = alpha_ref[...].astype(f32)     # (K, TN)

    # sum_c (real - mean)^2: statically unrolled over C (C=4) so no (C, K, TN)
    # temporary is materialized; each mean plane is loaded + upcast per-c.
    sq = None
    for c in range(n_feat):
        d = real[c:c + 1, :] - mean_ref[c].astype(f32)     # (K, TN)
        sq = d * d if sq is None else sq + d * d           # (K, TN)

    exp_term = -0.5 * sq * (sinv * sinv)   # (K, TN), always <= 0
    w = alpha * sinv + eps                 # (K, TN), always >= eps > 0

    # Weighted logsumexp over the K mixture components, stabilized at
    # m = max_k exp_term:
    #   logsumexp_k(log w_k + e_k) = m + log(sum_k w_k * exp(e_k - m))
    # Stable here because e_k - m <= 0 and w_k >= eps bounds s away from 0.
    m = jnp.max(exp_term, axis=0, keepdims=True)                   # (1, TN)
    s = jnp.sum(w * jnp.exp(exp_term - m), axis=0, keepdims=True)  # (1, TN)

    out_ref[...] = -(m + jnp.log(s) - 0.5 * n_feat * _LOG_2PI)     # (1, TN)


def _pick_row_tile(n_rows, row_tile):
    """Lane-aligned tile size, keeping >=2 grid steps for v7x's two TCs."""
    if n_rows <= 4 * 128:
        return n_rows                       # tiny: single full-extent tile
    assert row_tile % 128 == 0, "row_tile must be lane-aligned (128)"
    half = 128 * pl.cdiv(n_rows, 2 * 128)   # ~N/2 rounded up to 128
    return min(row_tile, half)


def pack_mdn_inputs(real, mean, sigma_inv, alpha, pack_dtype=jnp.bfloat16):
    """Build the lane-major (rows-in-lanes) inputs the kernel consumes.

    In a fused pipeline the producer of `mean`/`sigma_inv`/`alpha` should emit
    this layout directly (it is just a different output layout for its final
    matmul/activation), which removes the relayout HBM round-trip entirely.
    Here the bf16 cast is folded into the same fused relayout so its writeback
    and the kernel's reads are half-width.
    """
    C = real.shape[-1]
    K = mean.shape[-2]
    dt = real.dtype if pack_dtype is None else pack_dtype
    real_t = real.astype(dt).reshape(-1, C).T                             # (C, N)
    mean_t = jnp.transpose(mean.astype(dt).reshape(-1, K, C), (2, 1, 0))  # (C, K, N)
    sinv_t = sigma_inv.astype(dt).reshape(-1, K).T                        # (K, N)
    alpha_t = alpha.astype(dt).reshape(-1, K).T                           # (K, N)
    return real_t, mean_t, sinv_t, alpha_t


def mixture_density_loss_packed(real_t, mean_t, sinv_t, alpha_t, *,
                                eps=1e-05, row_tile=32768):
    """Loss from pre-packed lane-major inputs (see pack_mdn_inputs)."""
    C, N = real_t.shape
    K = sinv_t.shape[0]

    tn = _pick_row_tile(N, row_tile)
    grid = (pl.cdiv(N, tn),)

    kernel = functools.partial(_mdn_loss_kernel, eps=float(eps), n_feat=C)

    per_row = pl.pallas_call(
        kernel,
        out_shape=jax.ShapeDtypeStruct((1, N), jnp.float32),
        grid_spec=pltpu.PrefetchScalarGridSpec(
            num_scalar_prefetch=0,
            grid=grid,
            in_specs=[
                pl.BlockSpec((C, tn), lambda i: (0, i)),
                pl.BlockSpec((C, K, tn), lambda i: (0, 0, i)),
                pl.BlockSpec((K, tn), lambda i: (0, i)),
                pl.BlockSpec((K, tn), lambda i: (0, i)),
            ],
            out_specs=pl.BlockSpec((1, tn), lambda i: (0, i)),
        ),
        compiler_params=pltpu.CompilerParams(
            # Single row axis, fully independent per lane -> megacore shards.
            dimension_semantics=("parallel",),
            # Double-buffered blocks + f32 temporaries stay well under this;
            # 48 MiB fits v7x's 64 MiB VMEM (v5e/v6e have 128 MiB).
            vmem_limit_bytes=48 * 1024 * 1024,
        ),
    )(real_t, mean_t, sinv_t, alpha_t)

    # Final exact mean over all rows in plain JAX (keeps the grid parallel,
    # no serial scalar accumulation inside the kernel).
    return jnp.mean(per_row)


def mixture_density_loss_pallas(real, mean, sigma_inv, alpha, eps=1e-05,
                                row_tile=32768, pack_dtype=jnp.bfloat16):
    """real [..., C]; mean [..., K, C]; sigma_inv/alpha [..., K] -> scalar.

    pack_dtype=jnp.bfloat16 (default) halves HBM traffic; compute is f32.
    Pass pack_dtype=jnp.float32 (or None) for exact f32 parity with the
    reference.
    """
    packed = pack_mdn_inputs(real, mean, sigma_inv, alpha, pack_dtype)
    return mixture_density_loss_packed(*packed, eps=eps, row_tile=row_tile)


def mixture_density_loss_ref(real, mean, sigma_inv, alpha, eps=1e-05):
    C = real.shape[-1]
    exp_term = -0.5 * jnp.sum((real[..., None, :] - mean) ** 2, -1) * sigma_inv ** 2
    ln_frac = jnp.log(alpha * sigma_inv + eps) - 0.5 * C * _LOG_2PI
    expected = -jax.scipy.special.logsumexp(ln_frac + exp_term, axis=-1)
    return jnp.mean(expected)


if __name__ == "__main__":
    # Small shapes implied by the forward: batch=2, seq=8, K=8 mixture
    # components, C=4 target dims.
    B, T, K, C = 2, 8, 8, 4
    key = jax.random.PRNGKey(0)
    k1, k2, k3, k4 = jax.random.split(key, 4)

    real = jax.random.normal(k1, (B, T, C), dtype=jnp.float32)
    mean = jax.random.normal(k2, (B, T, K, C), dtype=jnp.float32)
    sigma_inv = jax.nn.softplus(jax.random.normal(k3, (B, T, K),
                                                  dtype=jnp.float32)) + 0.1
    alpha = jax.nn.softmax(jax.random.normal(k4, (B, T, K),
                                             dtype=jnp.float32), axis=-1)

    # 1) Exact-parity path: f32 HBM representation.
    loss_f32 = jax.block_until_ready(
        mixture_density_loss_pallas(real, mean, sigma_inv, alpha,
                                    pack_dtype=jnp.float32))
    ref_f32 = mixture_density_loss_ref(real, mean, sigma_inv, alpha)
    assert jnp.allclose(loss_f32, ref_f32, rtol=1e-5, atol=1e-5), (loss_f32, ref_f32)

    # 2) Default bandwidth-saving path: bf16 HBM representation, f32 compute.
    #    Compare against the reference evaluated on identically-rounded inputs
    #    (kernel math is exact; only the input representation is bf16).
    loss_bf16 = jax.block_until_ready(
        mixture_density_loss_pallas(real, mean, sigma_inv, alpha))
    rd = lambda x: x.astype(jnp.bfloat16).astype(jnp.float32)
    ref_bf16 = mixture_density_loss_ref(rd(real), rd(mean), rd(sigma_inv), rd(alpha))
    assert jnp.allclose(loss_bf16, ref_bf16, rtol=1e-4, atol=1e-4), (loss_bf16, ref_bf16)

    # 3) Slightly larger case to exercise the multi-step "parallel" grid and
    #    the partial last tile (N = 800 rows -> 2 grid steps of 512 lanes).
    B2, T2 = 4, 200
    j1, j2, j3, j4 = jax.random.split(jax.random.PRNGKey(1), 4)
    real2 = jax.random.normal(j1, (B2, T2, C), dtype=jnp.float32)
    mean2 = jax.random.normal(j2, (B2, T2, K, C), dtype=jnp.float32)
    sinv2 = jax.nn.softplus(jax.random.normal(j3, (B2, T2, K),
                                              dtype=jnp.float32)) + 0.1
    alpha2 = jax.nn.softmax(jax.random.normal(j4, (B2, T2, K),
                                              dtype=jnp.float32), axis=-1)
    loss2 = jax.block_until_ready(
        mixture_density_loss_pallas(real2, mean2, sinv2, alpha2,
                                    pack_dtype=jnp.float32))
    ref2 = mixture_density_loss_ref(real2, mean2, sinv2, alpha2)
    assert jnp.allclose(loss2, ref2, rtol=1e-5, atol=1e-5), (loss2, ref2)

    print("KERNEL_OK")
</pallas_src>

<mosaic_0001>
module attributes {stable_mosaic.version = 11 : i64} {
  func.func @_mdn_loss_kernel(%arg0: i32, %arg1: memref<4x16xf32, #tpu.memory_space<vmem>>, %arg2: memref<4x8x16xf32, #tpu.memory_space<vmem>>, %arg3: memref<8x16xf32, #tpu.memory_space<vmem>>, %arg4: memref<8x16xf32, #tpu.memory_space<vmem>>, %arg5: memref<1x16xf32, #tpu.memory_space<vmem>>) attributes {dimension_semantics = [#tpu.dimension_semantics<parallel>], iteration_bounds = array<i64: 1>, scalar_prefetch = 0 : i64, scratch_operands = 0 : i64, tpu.core_type = #tpu.core_type<tc>, window_params = [{transform_indices = @transform_0, window_bounds = array<i64: 4, 16>}, {transform_indices = @transform_1, window_bounds = array<i64: 4, 8, 16>}, {transform_indices = @transform_2, window_bounds = array<i64: 8, 16>}, {transform_indices = @transform_3, window_bounds = array<i64: 8, 16>}, {transform_indices = @transform_4, window_bounds = array<i64: 1, 16>}]} {
    %c0 = arith.constant 0 : index
    %c0_0 = arith.constant 0 : index
    %0 = vector.load %arg1[%c0, %c0_0] : memref<4x16xf32, #tpu.memory_space<vmem>>, vector<4x16xf32>
    %c0_1 = arith.constant 0 : index
    %c0_2 = arith.constant 0 : index
    %1 = vector.load %arg3[%c0_1, %c0_2] : memref<8x16xf32, #tpu.memory_space<vmem>>, vector<8x16xf32>
    %c0_3 = arith.constant 0 : index
    %c0_4 = arith.constant 0 : index
    %2 = vector.load %arg4[%c0_3, %c0_4] : memref<8x16xf32, #tpu.memory_space<vmem>>, vector<8x16xf32>
    %3 = vector.extract_strided_slice %0 {offsets = [0, 0], sizes = [1, 16], strides = [1, 1]} : vector<4x16xf32> to vector<1x16xf32>
    %c0_5 = arith.constant 0 : index
    %c0_6 = arith.constant 0 : index
    %c0_7 = arith.constant 0 : index
    %4 = vector.load %arg2[%c0_5, %c0_6, %c0_7] : memref<4x8x16xf32, #tpu.memory_space<vmem>>, vector<1x8x16xf32>
    %5 = vector.shape_cast %4 : vector<1x8x16xf32> to vector<8x16xf32>
    %6 = vector.broadcast %3 : vector<1x16xf32> to vector<8x16xf32>
    %7 = arith.subf %6, %5 : vector<8x16xf32>
    %8 = arith.mulf %7, %7 : vector<8x16xf32>
    %9 = vector.extract_strided_slice %0 {offsets = [1, 0], sizes = [1, 16], strides = [1, 1]} : vector<4x16xf32> to vector<1x16xf32>
    %c1 = arith.constant 1 : index
    %c0_8 = arith.constant 0 : index
    %c0_9 = arith.constant 0 : index
    %10 = vector.load %arg2[%c1, %c0_8, %c0_9] : memref<4x8x16xf32, #tpu.memory_space<vmem>>, vector<1x8x16xf32>
    %11 = vector.shape_cast %10 : vector<1x8x16xf32> to vector<8x16xf32>
    %12 = vector.broadcast %9 : vector<1x16xf32> to vector<8x16xf32>
    %13 = arith.subf %12, %11 : vector<8x16xf32>
    %14 = arith.mulf %13, %13 : vector<8x16xf32>
    %15 = arith.addf %8, %14 : vector<8x16xf32>
    %16 = vector.extract_strided_slice %0 {offsets = [2, 0], sizes = [1, 16], strides = [1, 1]} : vector<4x16xf32> to vector<1x16xf32>
    %c2 = arith.constant 2 : index
    %c0_10 = arith.constant 0 : index
    %c0_11 = arith.constant 0 : index
    %17 = vector.load %arg2[%c2, %c0_10, %c0_11] : memref<4x8x16xf32, #tpu.memory_space<vmem>>, vector<1x8x16xf32>
    %18 = vector.shape_cast %17 : vector<1x8x16xf32> to vector<8x16xf32>
    %19 = vector.broadcast %16 : vector<1x16xf32> to vector<8x16xf32>
    %20 = arith.subf %19, %18 : vector<8x16xf32>
    %21 = arith.mulf %20, %20 : vector<8x16xf32>
    %22 = arith.addf %15, %21 : vector<8x16xf32>
    %23 = vector.extract_strided_slice %0 {offsets = [3, 0], sizes = [1, 16], strides = [1, 1]} : vector<4x16xf32> to vector<1x16xf32>
    %c3 = arith.constant 3 : index
    %c0_12 = arith.constant 0 : index
    %c0_13 = arith.constant 0 : index
    %24 = vector.load %arg2[%c3, %c0_12, %c0_13] : memref<4x8x16xf32, #tpu.memory_space<vmem>>, vector<1x8x16xf32>
    %25 = vector.shape_cast %24 : vector<1x8x16xf32> to vector<8x16xf32>
    %26 = vector.broadcast %23 : vector<1x16xf32> to vector<8x16xf32>
    %27 = arith.subf %26, %25 : vector<8x16xf32>
    %28 = arith.mulf %27, %27 : vector<8x16xf32>
    %29 = arith.addf %22, %28 : vector<8x16xf32>
    %cst = arith.constant -5.000000e-01 : f32
    %30 = vector.broadcast %cst : f32 to vector<8x16xf32>
    %31 = arith.mulf %30, %29 : vector<8x16xf32>
    %32 = arith.mulf %1, %1 : vector<8x16xf32>
    %33 = arith.mulf %31, %32 : vector<8x16xf32>
    %34 = arith.mulf %2, %1 : vector<8x16xf32>
    %cst_14 = arith.constant 9.99999974E-6 : f32
    %35 = vector.broadcast %cst_14 : f32 to vector<8x16xf32>
    %36 = arith.addf %34, %35 : vector<8x16xf32>
    %cst_15 = arith.constant dense<0xFF800000> : vector<16xf32>
    %37 = vector.multi_reduction <maximumf>, %33, %cst_15 [0] : vector<8x16xf32> to vector<16xf32>
    %38 = vector.shape_cast %37 : vector<16xf32> to vector<1x16xf32>
    %39 = vector.broadcast %38 : vector<1x16xf32> to vector<8x16xf32>
    %40 = arith.subf %33, %39 : vector<8x16xf32>
    %41 = math.exp %40 : vector<8x16xf32>
    %42 = arith.mulf %36, %41 : vector<8x16xf32>
    %cst_16 = arith.constant dense<0.000000e+00> : vector<16xf32>
    %43 = vector.multi_reduction <add>, %42, %cst_16 [0] : vector<8x16xf32> to vector<16xf32>
    %44 = vector.shape_cast %43 : vector<16xf32> to vector<1x16xf32>
    %45 = math.log %44 : vector<1x16xf32>
    %46 = arith.addf %38, %45 : vector<1x16xf32>
    %cst_17 = arith.constant 3.67575407 : f32
    %47 = vector.broadcast %cst_17 : f32 to vector<1x16xf32>
    %48 = arith.subf %46, %47 : vector<1x16xf32>
    %cst_18 = arith.constant 0.000000e+00 : f32
    %49 = vector.broadcast %cst_18 : f32 to vector<1x16xf32>
    %50 = arith.subf %49, %48 : vector<1x16xf32>
    %c0_19 = arith.constant 0 : index
    %c0_20 = arith.constant 0 : index
    %51 = vector.load %arg5[%c0_19, %c0_20] : memref<1x16xf32, #tpu.memory_space<vmem>>, vector<1x16xf32>
    tpu.vector_store %arg5[%c0_19, %c0_20], %50 {strides = array<i32>} : memref<1x16xf32, #tpu.memory_space<vmem>>, vector<1x16xf32>,
    return
  }
  func.func @transform_0(%arg0: i32) -> (i32, i32) {
    %c0_i32 = arith.constant 0 : i32
    %c0_i32_0 = arith.constant 0 : i32
    return %c0_i32, %arg0 : i32, i32
  }
  func.func @transform_1(%arg0: i32) -> (i32, i32, i32) {
    %c0_i32 = arith.constant 0 : i32
    %c0_i32_0 = arith.constant 0 : i32
    %c0_i32_1 = arith.constant 0 : i32
    return %c0_i32, %c0_i32_0, %arg0 : i32, i32, i32
  }
  func.func @transform_2(%arg0: i32) -> (i32, i32) {
    %c0_i32 = arith.constant 0 : i32
    %c0_i32_0 = arith.constant 0 : i32
    return %c0_i32, %arg0 : i32, i32
  }
  func.func @transform_3(%arg0: i32) -> (i32, i32) {
    %c0_i32 = arith.constant 0 : i32
    %c0_i32_0 = arith.constant 0 : i32
    return %c0_i32, %arg0 : i32, i32
  }
  func.func @transform_4(%arg0: i32) -> (i32, i32) {
    %c0_i32 = arith.constant 0 : i32
    %c0_i32_0 = arith.constant 0 : i32
    return %c0_i32, %arg0 : i32, i32
  }
}

</mosaic_0001>

<llo_original>
// kernel: tpu_custom_call.1
$region0: #{tpu_custom_call.1}
  #allocation0 [shape = 'u32[]', space=smem, size = 0x4, offset = 0x4, fixed_abs, tag = 'smem constant byte address 0x4 - core index']
  #allocation1 [shape = 'u32[144,128]{1,0:T(1,128)}', space=vmem, size = 0x12000, scoped, tag = 'internal scratch']
  %s0 = inlined_call_operand.hbm [shape: f32[4,16], index: 0, kind: input, shape index: {}]
  %s1 = inlined_call_operand.hbm [shape: f32[4,8,16], index: 1, kind: input, shape index: {}]
  %s2 = inlined_call_operand.hbm [shape: f32[8,16], index: 2, kind: input, shape index: {}]
  %s3 = inlined_call_operand.vmem [shape: f32[8,16], index: 3, kind: input, shape index: {}]
  %s4 = inlined_call_operand.hbm [shape: f32[1,16], index: 4, kind: output, shape index: {}]
  %s5 = sld [smem:[#allocation0]]
  $region38: #{tpu_custom_call.1} parent=0
    _
  %s7 = ssub.s32 1, %s5
  %s8 = scalar_select 0, %s7, %s5
  $region1: #{tpu_custom_call.1} parent=0
    #allocation2 [shape = 'u8[2048]{0}', space=vmem, size = 0x800, scoped, tag = 'input window, operand 0, single buffered']
    #allocation3 [shape = 's32[1]{0}', space=sflag, size = 0x4, scoped, tag = 'scoped memory for tpu_custom_call.1']
    #allocation4 [shape = 's32[1]{0}', space=sflag, size = 0x4, scoped, tag = 'scoped memory for tpu_custom_call.1']
    #allocation5 [shape = 'u8[16384]{0}', space=vmem, size = 0x4000, scoped, tag = 'input window, operand 1, single buffered']
    #allocation6 [shape = 's32[1]{0}', space=sflag, size = 0x4, scoped, tag = 'scoped memory for tpu_custom_call.1']
    #allocation7 [shape = 'u8[4096]{0}', space=vmem, size = 0x1000, scoped, tag = 'input window, operand 2, single buffered']
    #allocation8 [shape = 'u8[512]{0}', space=vmem, size = 0x400, scoped, tag = 'output window, operand 0, single buffered']
    %9 = vsyncpa [#allocation3], 0
    %10 = vsyncpa [#allocation6], 0
    %11 = vsyncpa [#allocation4], 0
    // Predicated region
    $region2: #{tpu_custom_call.1} parent=1 // pred_check
      _
    $region3: #{tpu_custom_call.1} parent=1 // pred_check_branch
      %13 = sbr.rel (0) target = $region5
    $region4: #{tpu_custom_call.1} parent=1 // pred_region
      %s15 = ssub.s32 64, 64
      %16 = vsyncadd [#allocation3], %s15
      %s18 = sshll.u32 [#allocation2], 4
      %s19 = int_to_ptr.vmem [resolvable:$true] %s18
      %21 = dma.hbm_to_vmem [thread:$0]  %s0, 64, %s19, [#allocation3]
    $region5: #{tpu_custom_call.1} parent=1 // pred_fallthru
      _
    // Predicated region
    $region6: #{tpu_custom_call.1} parent=1 // pred_check
      _
    $region7: #{tpu_custom_call.1} parent=1 // pred_check_branch
      %23 = sbr.rel (0) target = $region9
    $region8: #{tpu_custom_call.1} parent=1 // pred_region
      %s25 = ssub.s32 512, 512
      %26 = vsyncadd [#allocation6], %s25
      %s27 = sshll.u32 [#allocation5], 4
      %s28 = int_to_ptr.vmem [resolvable:$true] %s27
      %33 = dma.hbm_to_vmem [thread:$0]  %s1, 512, %s28, [#allocation6], 128, 128, 8
    $region9: #{tpu_custom_call.1} parent=1 // pred_fallthru
      _
    // Predicated region
    $region10: #{tpu_custom_call.1} parent=1 // pred_check
      _
    $region11: #{tpu_custom_call.1} parent=1 // pred_check_branch
      %35 = sbr.rel (0) target = $region13
    $region12: #{tpu_custom_call.1} parent=1 // pred_region
      %s37 = ssub.s32 128, 128
      %38 = vsyncadd [#allocation6], %s37
      %s40 = sshll.u32 [#allocation7], 4
      %s41 = int_to_ptr.vmem [resolvable:$true] %s40
      %43 = dma.hbm_to_vmem [thread:$0]  %s2, 128, %s41, [#allocation6]
    $region13: #{tpu_custom_call.1} parent=1 // pred_fallthru
      _
    // Predicated region
    $region14: #{tpu_custom_call.1} parent=1 // pred_check
      _
    $region15: #{tpu_custom_call.1} parent=1 // pred_check_branch
      %45 = sbr.rel (0) target = $region17
    $region16: #{tpu_custom_call.1} parent=1 // pred_region
      _
    $region17: #{tpu_custom_call.1} parent=1 // pred_fallthru
      _
    // Predicated region
    $region18: #{tpu_custom_call.1} parent=1 // pred_check
      _
    $region19: #{tpu_custom_call.1} parent=1 // pred_check_branch
      %47 = sbr.rel (0) target = $region21
    $region20: #{tpu_custom_call.1} parent=1 // pred_region
      %48 = dma.done [#allocation3], 64
    $region21: #{tpu_custom_call.1} parent=1 // pred_fallthru
      _
    // Predicated region
    $region22: #{tpu_custom_call.1} parent=1 // pred_check
      _
    $region23: #{tpu_custom_call.1} parent=1 // pred_check_branch
      %50 = sbr.rel (0) target = $region25
    $region24: #{tpu_custom_call.1} parent=1 // pred_region
      %51 = dma.done [#allocation6], 512
    $region25: #{tpu_custom_call.1} parent=1 // pred_fallthru
      _
    // Predicated region
    $region26: #{tpu_custom_call.1} parent=1 // pred_check
      _
    $region27: #{tpu_custom_call.1} parent=1 // pred_check_branch
      %53 = sbr.rel (0) target = $region29
    $region28: #{tpu_custom_call.1} parent=1 // pred_region
      %54 = dma.done [#allocation6], 128
    $region29: #{tpu_custom_call.1} parent=1 // pred_fallthru
      _
    %v55 = vld [vmem:[#allocation2] sm:$0xf]
    %v56 = vld [vmem:[#allocation7] sm:$0xff]
    %v57 = vld [vmem:[%s3] sm:$0xff]
    %v58 = vld [vmem:[#allocation5] sm:$0xff]
    %v59 = vlaneseq
    %v60 = vshrl.u32 %v59, 7
    %v61 = vsub.s32 0, %v60
    %v62 = vrot.slane %v55, %v61
    %v63 = vsub.f32 %v62, %v58
    %v64 = vmul.f32 %v63, %v63
    %s65 = scalar_lea.vmem [#allocation5], 8
    %v66 = vld [vmem:[%s65] sm:$0xff]
    %v67 = vlaneseq
    %v68 = vshrl.u32 %v67, 7
    %v69 = vsub.s32 1, %v68
    %v70 = vrot.slane %v55, %v69
    %v71 = vsub.f32 %v70, %v66
    %v72 = vmul.f32 %v71, %v71
    %v73 = vadd.f32 %v64, %v72
    %s74 = scalar_lea.vmem [#allocation5], 16
    %v75 = vld [vmem:[%s74] sm:$0xff]
    %v76 = vlaneseq
    %v77 = vshrl.u32 %v76, 7
    %v78 = vsub.s32 2, %v77
    %v79 = vrot.slane %v55, %v78
    %v80 = vsub.f32 %v79, %v75
    %v81 = vmul.f32 %v80, %v80
    %v82 = vadd.f32 %v73, %v81
    %s83 = scalar_lea.vmem [#allocation5], 24
    %v84 = vld [vmem:[%s83] sm:$0xff]
    %v85 = vlaneseq
    %v86 = vshrl.u32 %v85, 7
    %v87 = vsub.s32 3, %v86
    %v88 = vrot.slane %v55, %v87
    %v89 = vsub.f32 %v88, %v84
    %v90 = vmul.f32 %v89, %v89
    %v91 = vadd.f32 %v82, %v90
    %v92 = vmul.f32 %v91, -0.5
    %v93 = vmul.f32 %v56, %v56
    %v94 = vmul.f32 %v92, %v93
    %v95 = vmul.f32 %v57, %v56
    %v96 = vadd.f32 %v95, 1e-05
    %vm97 = vcmask 130048
    %v98 = vsel %vm97, %v94, -inf
    %v99 = vrot.slane %v98, 4
    %v100 = vmax.f32 %v98, %v99
    %v101 = vrot.slane %v100, 2
    %v102 = vmax.f32 %v100, %v101
    %v103 = vrot.slane %v102, 1
    %v104 = vmax.f32 %v102, %v103
    %v105 = vsub.f32 %v94, %v104
    %v106 = vmul.f32 %v105, 1.442695
    %v107 = vpow.pop %v106
    %v108 = vmul.f32 %v96, %v107
    %v109 = vsel %vm97, %v108, 0.0
    %v110 = vrot.slane %v109, 4
    %v111 = vadd.f32 %v109, %v110
    %v112 = vrot.slane %v111, 2
    %v113 = vadd.f32 %v111, %v112
    %v114 = vrot.slane %v113, 1
    %v115 = vadd.f32 %v113, %v114
    %v116 = vlog2.pop %v115
    %v117 = vmul.f32 %v116, 0.6931472
    %v118 = vadd.f32 %v104, %v117
    %v119 = vsub.f32 %v118, 3.675754
    %v120 = vsub.f32 0.0, %v119
    %vm121 = vcmask 122880
    %122 = vst.msk [vmem:[#allocation8] sm:$0x1] %vm121, %v120
    // Predicated region
    $region30: #{tpu_custom_call.1} parent=1 // pred_check
      _
    $region31: #{tpu_custom_call.1} parent=1 // pred_check_branch
      %124 = sbr.rel (0) target = $region33
    $region32: #{tpu_custom_call.1} parent=1 // pred_region
      %s126 = ssub.s32 16, 16
      %127 = vsyncadd [#allocation4], %s126
      %s129 = sshll.u32 [#allocation8], 4
      %s130 = int_to_ptr.vmem [resolvable:$true] %s129
      %132 = dma.vmem_to_hbm [thread:$0]  %s130, 16, %s4, [#allocation4]
    $region33: #{tpu_custom_call.1} parent=1 // pred_fallthru
      _
    // Predicated region
    $region34: #{tpu_custom_call.1} parent=1 // pred_check
      _
    $region35: #{tpu_custom_call.1} parent=1 // pred_check_branch
      %134 = sbr.rel (0) target = $region37
    $region36: #{tpu_custom_call.1} parent=1 // pred_region
      %135 = dma.done [#allocation4], 16
    $region37: #{tpu_custom_call.1} parent=1 // pred_fallthru
      _
    %136 = vsyncpa [#allocation3], 1
    %137 = vsyncpa [#allocation6], 1
    %138 = vsyncpa [#allocation4], 1

</llo_original>
